<compile_context>
chip_gen: v7x
topology: tpu7x:2x2x1
jax: 0.10.0
libtpu: 0.0.40
codegen_flags: <defaults>
</compile_context>

<pallas_src>
import functools

import jax
import jax.numpy as jnp
from jax.experimental import pallas as pl
from jax.experimental.pallas import tpu as pltpu


def _relu_linear_kernel(x_ref, w_ref, b_ref, o_ref):
    # x_ref: (TB, in)   VMEM batch tile (streamed per grid step)
    # w_ref: (out, in)  VMEM, resident across grid steps (PyTorch layout)
    # b_ref: (1, out)   VMEM, resident
    # o_ref: (TB, out)  VMEM output tile
    acc = jax.lax.dot_general(
        x_ref[...], w_ref[...],
        dimension_numbers=(((1,), (1,)), ((), ())),   # x @ W.T on the MXU
        preferred_element_type=jnp.float32,
    )
    o_ref[...] = jnp.maximum(acc + b_ref[...], 0.0).astype(o_ref.dtype)


@functools.partial(jax.jit, static_argnames=("block_batch",))
def relu_layer_forward(x, weight, bias, *, block_batch=1024):
    """Pallas equivalent of ReLULayer(in_features, out_features).forward(x).

    x:      (B, in_features)            float32
    weight: (out_features, in_features) (PyTorch nn.Linear layout, NOT transposed)
    bias:   (out_features,)
    returns (B, out_features)
    """
    B, in_features = x.shape
    out_features = weight.shape[0]

    # Sublane-aligned batch tile; full-extent if the whole batch is smaller.
    TB = min(block_batch, B)
    if TB != B:
        TB = max(8, (TB // 8) * 8)
    grid = (pl.cdiv(B, TB),)

    b2 = bias.reshape(1, out_features)  # 2-D so it sits cleanly in VMEM

    itemsize = jnp.dtype(x.dtype).itemsize
    cost = pl.CostEstimate(
        flops=2 * B * in_features * out_features,
        transcendentals=0,
        bytes_accessed=(x.size + weight.size + bias.size + B * out_features)
        * itemsize,
    )

    return pl.pallas_call(
        _relu_linear_kernel,
        out_shape=jax.ShapeDtypeStruct((B, out_features), x.dtype),
        grid_spec=pl.GridSpec(
            grid=grid,
            in_specs=[
                pl.BlockSpec((TB, in_features), lambda i: (i, 0)),
                pl.BlockSpec((out_features, in_features), lambda i: (0, 0)),
                pl.BlockSpec((1, out_features), lambda i: (0, 0)),
            ],
            out_specs=pl.BlockSpec((TB, out_features), lambda i: (i, 0)),
        ),
        compiler_params=pltpu.CompilerParams(
            dimension_semantics=("parallel",),   # independent batch tiles
        ),
        cost_estimate=cost,
    )(x, weight, b2)


def _init_relu_layer_params(key, in_features, out_features):
    # Mirror ReLULayer.init_weights(): xavier_normal_ weight, zero bias.
    std = (2.0 / (in_features + out_features)) ** 0.5
    weight = std * jax.random.normal(
        key, (out_features, in_features), jnp.float32)
    bias = jnp.zeros((out_features,), jnp.float32)
    return weight, bias


if __name__ == "__main__":
    key = jax.random.PRNGKey(0)
    k_x, k_w = jax.random.split(key)

    batch = 64
    in_features = 32
    out_features = 256

    x = jax.random.normal(k_x, (batch, in_features), jnp.float32)
    weight, bias = _init_relu_layer_params(k_w, in_features, out_features)

    # Small block_batch so this demo exercises a real multi-step batch-tiled
    # grid (grid=(4,)); production callers keep the default TB=1024.
    y = relu_layer_forward(x, weight, bias, block_batch=16)
    jax.block_until_ready(y)

    # Reference check in plain JAX (same math as torch: relu(x @ W.T + b)).
    y_ref = jnp.maximum(x @ weight.T + bias, 0.0)
    assert y.shape == (batch, out_features)
    assert jnp.allclose(y, y_ref, atol=1e-5, rtol=1e-5), "mismatch vs reference"

    print("KERNEL_OK")
</pallas_src>

<mosaic_0001>
module attributes {stable_mosaic.version = 11 : i64} {
  func.func @_relu_linear_kernel(%arg0: i32, %arg1: memref<16x32xf32, #tpu.memory_space<vmem>>, %arg2: memref<256x32xf32, #tpu.memory_space<vmem>>, %arg3: memref<1x256xf32, #tpu.memory_space<vmem>>, %arg4: memref<16x256xf32, #tpu.memory_space<vmem>>) attributes {dimension_semantics = [#tpu.dimension_semantics<parallel>], iteration_bounds = array<i64: 4>, scalar_prefetch = 0 : i64, scratch_operands = 0 : i64, tpu.core_type = #tpu.core_type<tc>, window_params = [{transform_indices = @transform_0, window_bounds = array<i64: 16, 32>}, {pipeline_mode = #tpu.pipeline_mode<synchronous>, transform_indices = @transform_1, window_bounds = array<i64: 256, 32>}, {pipeline_mode = #tpu.pipeline_mode<synchronous>, transform_indices = @transform_2, window_bounds = array<i64: 1, 256>}, {transform_indices = @transform_3, window_bounds = array<i64: 16, 256>}]} {
    %c0 = arith.constant 0 : index
    %c0_0 = arith.constant 0 : index
    %0 = vector.load %arg1[%c0, %c0_0] : memref<16x32xf32, #tpu.memory_space<vmem>>, vector<16x32xf32>
    %c0_1 = arith.constant 0 : index
    %c0_2 = arith.constant 0 : index
    %1 = vector.load %arg2[%c0_1, %c0_2] : memref<256x32xf32, #tpu.memory_space<vmem>>, vector<256x32xf32>
    %cst = arith.constant dense<0.000000e+00> : vector<16x256xf32>
    %2 = tpu.matmul %0, %1, %cst {dimension_numbers = #tpu.dot_dimension_numbers<[1], [1], [0], [0], [0, 0, 1, 0], [], []>} : vector<16x32xf32>, vector<256x32xf32>, vector<16x256xf32> -> vector<16x256xf32>
    %c0_3 = arith.constant 0 : index
    %c0_4 = arith.constant 0 : index
    %3 = vector.load %arg3[%c0_3, %c0_4] : memref<1x256xf32, #tpu.memory_space<vmem>>, vector<1x256xf32>
    %4 = vector.broadcast %3 : vector<1x256xf32> to vector<16x256xf32>
    %5 = arith.addf %2, %4 : vector<16x256xf32>
    %cst_5 = arith.constant 0.000000e+00 : f32
    %6 = vector.broadcast %cst_5 : f32 to vector<16x256xf32>
    %7 = arith.maximumf %5, %6 : vector<16x256xf32>
    %c0_6 = arith.constant 0 : index
    %c0_7 = arith.constant 0 : index
    %8 = vector.load %arg4[%c0_6, %c0_7] : memref<16x256xf32, #tpu.memory_space<vmem>>, vector<16x256xf32>
    tpu.vector_store %arg4[%c0_6, %c0_7], %7 {strides = array<i32>} : memref<16x256xf32, #tpu.memory_space<vmem>>, vector<16x256xf32>,
    return
  }
  func.func @transform_0(%arg0: i32) -> (i32, i32) {
    %c0_i32 = arith.constant 0 : i32
    %c0_i32_0 = arith.constant 0 : i32
    return %arg0, %c0_i32 : i32, i32
  }
  func.func @transform_1(%arg0: i32) -> (i32, i32) {
    %c0_i32 = arith.constant 0 : i32
    %c0_i32_0 = arith.constant 0 : i32
    %c0_i32_1 = arith.constant 0 : i32
    return %c0_i32, %c0_i32_0 : i32, i32
  }
  func.func @transform_2(%arg0: i32) -> (i32, i32) {
    %c0_i32 = arith.constant 0 : i32
    %c0_i32_0 = arith.constant 0 : i32
    %c0_i32_1 = arith.constant 0 : i32
    return %c0_i32, %c0_i32_0 : i32, i32
  }
  func.func @transform_3(%arg0: i32) -> (i32, i32) {
    %c0_i32 = arith.constant 0 : i32
    %c0_i32_0 = arith.constant 0 : i32
    return %arg0, %c0_i32 : i32, i32
  }
}

</mosaic_0001>

<llo_original>
// kernel: relu_layer_forward.1
$region0: #{relu_layer_forward.1}
  #allocation0 [shape = 'u32[]', space=smem, size = 0x4, offset = 0x4, fixed_abs, tag = 'smem constant byte address 0x4 - core index']
  #allocation1 [shape = 'u32[144,128]{1,0:T(1,128)}', space=vmem, size = 0x12000, scoped, tag = 'internal scratch']
  %s0 = inlined_call_operand.vmem [shape: f32[64,32], index: 0, kind: input, shape index: {}]
  %s1 = inlined_call_operand.vmem [shape: f32[256,32], index: 1, kind: input, shape index: {}]
  %s2 = inlined_call_operand.vmem [shape: f32[1,256], index: 2, kind: input, shape index: {}]
  %s3 = inlined_call_operand.hbm [shape: f32[64,256], index: 3, kind: output, shape index: {}]
  %s4 = sld [smem:[#allocation0]]
  $region45: #{relu_layer_forward.1} parent=0
    _
  %s6 = ssub.s32 1, %s4
  %s7 = scalar_select 0, %s6, %s4
  $region1: #{relu_layer_forward.1} parent=0
    #allocation2 [shape = 'u8[32768]{0}', space=vmem, size = 0x8000, scoped, tag = 'output window, operand 0']
    #allocation3 [shape = 's32[2]{0}', space=sflag, size = 0x8, scoped, tag = 'scoped memory for relu_layer_forward.1']
    %8 = vsyncpa [#allocation3], 0
    %s9 = scalar_lea.sflag [#allocation3], 1
    %10 = vsyncpa %s9, 0
    loop: start=0, step=1, limit=6
    $region2: #{relu_layer_forward.1} parent=1 // loop_pre_header
      _
    $region3: #{relu_layer_forward.1} parent=1 // loop_header
      %s12 = sphi 0, %s16
      %p13 = scmp.ge.s32.totalorder %s12, 6
      %s22 = sphi 0, %s24
      %s25 = sphi 0, %s22
      %s26 = sphi 0, %s25
      %s42 = sphi 0, %s26
      %s46 = sphi 0, %s46
      %s48 = sphi 0, %s46
      %s49 = sphi 0, %s48
      %s63 = sphi 0, %s49
      %s67 = sphi 0, %s67
      %s69 = sphi 0, %s67
      %s70 = sphi 0, %s69
      %s84 = sphi 0, %s70
      %s90 = sphi 0, %s92
      %s93 = sphi 0, %s90
      %s94 = sphi 0, %s93
      %s110 = sphi 0, %s94
    $region4: #{relu_layer_forward.1} parent=1 // loop_header_branch
      %15 = sbr.rel (%p13) target = $region8
    $region5: #{relu_layer_forward.1} parent=1 // loop_body
      %s17 = ssub.s32 %s12, 1
      %s18 = ssub.s32 %s12, 2
      %s19 = sadd.s32 %s12, 1
      %s20 = ssub.s32 %s12, %s19
      %p21 = scmp.eq.s32.totalorder %s20, 0
      %s23 = sadd.s32 %s22, 1
      %s24 = scalar_select %p21, %s22, %s23
      %p27 = pneg %p21
      %p28 = scmp.eq.s32.totalorder %s12, 3
      %p29 = por %p27, %p28
      %p30 = scmp.ne.s32.totalorder %s22, %s25
      %p31 = scmp.eq.s32.totalorder %s12, 0
      %p32 = por %p30, %p31
      %p33 = scmp.ne.s32.totalorder %s22, %s25
      %p34 = scmp.eq.s32.totalorder %s17, 3
      %p35 = por %p33, %p34
      %p36 = scmp.ne.s32.totalorder %s25, %s26
      %p37 = scmp.eq.s32.totalorder %s17, 0
      %p38 = por %p36, %p37
      %p39 = scmp.ne.s32.totalorder %s25, %s26
      %p40 = scmp.eq.s32.totalorder %s18, 3
      %p41 = por %p39, %p40
      %p43 = scmp.ne.s32.totalorder %s26, %s42
      %p44 = scmp.eq.s32.totalorder %s18, 0
      %p45 = por %p43, %p44
      %s47 = sadd.s32 %s46, 1
      %p50 = scmp.eq.s32.totalorder %s12, 3
      %p51 = scmp.ne.s32.totalorder %s46, %s48
      %p52 = scmp.eq.s32.totalorder %s12, 0
      %p53 = por %p51, %p52
      %p54 = scmp.ne.s32.totalorder %s46, %s48
      %p55 = scmp.eq.s32.totalorder %s17, 3
      %p56 = por %p54, %p55
      %p57 = scmp.ne.s32.totalorder %s48, %s49
      %p58 = scmp.eq.s32.totalorder %s17, 0
      %p59 = por %p57, %p58
      %p60 = scmp.ne.s32.totalorder %s48, %s49
      %p61 = scmp.eq.s32.totalorder %s18, 3
      %p62 = por %p60, %p61
      %p64 = scmp.ne.s32.totalorder %s49, %s63
      %p65 = scmp.eq.s32.totalorder %s18, 0
      %p66 = por %p64, %p65
      %s68 = sadd.s32 %s67, 1
      %p71 = scmp.eq.s32.totalorder %s12, 3
      %p72 = scmp.ne.s32.totalorder %s67, %s69
      %p73 = scmp.eq.s32.totalorder %s12, 0
      %p74 = por %p72, %p73
      %p75 = scmp.ne.s32.totalorder %s67, %s69
      %p76 = scmp.eq.s32.totalorder %s17, 3
      %p77 = por %p75, %p76
      %p78 = scmp.ne.s32.totalorder %s69, %s70
      %p79 = scmp.eq.s32.totalorder %s17, 0
      %p80 = por %p78, %p79
      %p81 = scmp.ne.s32.totalorder %s69, %s70
      %p82 = scmp.eq.s32.totalorder %s18, 3
      %p83 = por %p81, %p82
      %p85 = scmp.ne.s32.totalorder %s70, %s84
      %p86 = scmp.eq.s32.totalorder %s18, 0
      %p87 = por %p85, %p86
      %s88 = ssub.s32 %s12, %s19
      %p89 = scmp.eq.s32.totalorder %s88, 0
      %s91 = sadd.s32 %s90, 1
      %s92 = scalar_select %p89, %s90, %s91
      %p95 = pneg %p89
      %p96 = scmp.eq.s32.totalorder %s12, 3
      %p97 = por %p95, %p96
      %p98 = scmp.ne.s32.totalorder %s90, %s93
      %p99 = scmp.eq.s32.totalorder %s12, 0
      %p100 = por %p98, %p99
      %p101 = scmp.ne.s32.totalorder %s90, %s93
      %p102 = scmp.eq.s32.totalorder %s17, 3
      %p103 = por %p101, %p102
      %p104 = scmp.ne.s32.totalorder %s93, %s94
      %p105 = scmp.eq.s32.totalorder %s17, 0
      %p106 = por %p104, %p105
      %p107 = scmp.ne.s32.totalorder %s93, %s94
      %p108 = scmp.eq.s32.totalorder %s18, 3
      %p109 = por %p107, %p108
      %p111 = scmp.ne.s32.totalorder %s94, %s110
      %p112 = scmp.eq.s32.totalorder %s18, 0
      %p113 = por %p111, %p112
      %p114 = scmp.le.s32.totalorder 1, %s12
      %p115 = scmp.lt.s32.totalorder %s12, 5
      %p116 = pnand %p114, %p115
      %p117 = pneg %p116
      // Predicated region
      $region9: #{relu_layer_forward.1} parent=5 // pred_check
        _
      $region10: #{relu_layer_forward.1} parent=5 // pred_check_branch
        %119 = sbr.rel (%p116) target = $region12
      $region11: #{relu_layer_forward.1} parent=5 // pred_region
        %s120 = ssub.s32 %s12, 1
        // Predicated region
        $region13: #{relu_layer_forward.1} parent=11 // pred_check
          %p121 = pneg %p59
        $region14: #{relu_layer_forward.1} parent=11 // pred_check_branch
          %123 = sbr.rel (%p121) target = $region16
        $region15: #{relu_layer_forward.1} parent=11 // pred_region
          _
        $region16: #{relu_layer_forward.1} parent=11 // pred_fallthru
          _
        // Predicated region
        $region17: #{relu_layer_forward.1} parent=11 // pred_check
          %p124 = pneg %p80
        $region18: #{relu_layer_forward.1} parent=11 // pred_check_branch
          %126 = sbr.rel (%p124) target = $region20
        $region19: #{relu_layer_forward.1} parent=11 // pred_region
          _
        $region20: #{relu_layer_forward.1} parent=11 // pred_fallthru
          _
      $region12: #{relu_layer_forward.1} parent=5 // pred_fallthru
        _
      %p127 = scmp.lt.s32.totalorder %s12, 4
      // Predicated region
      $region21: #{relu_layer_forward.1} parent=5 // pred_check
        %p128 = pneg %p127
      $region22: #{relu_layer_forward.1} parent=5 // pred_check_branch
        %130 = sbr.rel (%p128) target = $region24
      $region23: #{relu_layer_forward.1} parent=5 // pred_region
        // Predicated region
        $region25: #{relu_layer_forward.1} parent=23 // pred_check
          %p131 = pneg %p32
        $region26: #{relu_layer_forward.1} parent=23 // pred_check_branch
          %133 = sbr.rel (%p131) target = $region28
        $region27: #{relu_layer_forward.1} parent=23 // pred_region
          %s134 = smul.u32 2, %s12
          %p135 = scmp.lt.s32.totalorder %s134, 7
          %s136 = scalar_select %p135, %s134, 7
          %s137 = smul.addr %s136, 8
          %s138 = scalar_lea.vmem %s0, %s137
          %s139 = smul.u32 2, %s12
        $region28: #{relu_layer_forward.1} parent=23 // pred_fallthru
          _
      $region24: #{relu_layer_forward.1} parent=5 // pred_fallthru
        _
      %p140 = scmp.le.s32.totalorder 1, %s12
      %p141 = scmp.lt.s32.totalorder %s12, 5
      %p142 = pnand %p140, %p141
      %p143 = pneg %p142
      // Predicated region
      $region29: #{relu_layer_forward.1} parent=5 // pred_check
        _
      $region30: #{relu_layer_forward.1} parent=5 // pred_check_branch
        %145 = sbr.rel (%p142) target = $region32
      $region31: #{relu_layer_forward.1} parent=5 // pred_region
        %s146 = ssub.s32 %s12, 1
        %s147 = smul.u32 2, %s17
        %p148 = scmp.lt.s32.totalorder %s147, 7
        %s149 = scalar_select %p148, %s147, 7
        %s150 = smul.addr %s149, 8
        %s151 = scalar_lea.vmem %s0, %s150
        %p152 = pneg %p38
        %p153 = pneg %p35
        %p154 = pneg %p59
        %p155 = pneg %p56
        %p156 = pneg %p80
        %p157 = pneg %p77
        %p158 = pneg %p106
        %p159 = pneg %p103
        %s160 = sand.u32 %s93, 1
        %s161 = scalar_lea.sflag [#allocation3], %s160
        %s162 = sand.u32 %s93, 1
        %s163 = smul.addr %s162, 32
        %s164 = scalar_lea.vmem [#allocation2], %s163
        %s165 = smul.u32 2, %s17
        %p166 = scmp.lt.s32.totalorder %s165, 7
        %s167 = scalar_select %p166, %s165, 7
        %s168 = smul.addr %s167, 8
        %s169 = scalar_lea.vmem %s0, %s168
        %s170 = smul.u32 2, %s17
        %s171 = smul.u32 2, %s17
        %v172 = vld [vmem:[%s169] sm:$0xff]
        %v173 = vld [vmem:[%s169 + $0x8] sm:$0xff]
        %v174 = vld [vmem:[%s1] sm:$0xff]
        %v175 = vld [vmem:[%s1 + $0x8] sm:$0xff]
        %v176 = vld [vmem:[%s1 + $0x10] sm:$0xff]
        %v177 = vld [vmem:[%s1 + $0x18] sm:$0xff]
        %v178 = vld [vmem:[%s1 + $0x20] sm:$0xff]
        %v179 = vld [vmem:[%s1 + $0x28] sm:$0xff]
        %v180 = vld [vmem:[%s1 + $0x30] sm:$0xff]
        %v181 = vld [vmem:[%s1 + $0x38] sm:$0xff]
        %v182 = vld [vmem:[%s1 + $0x40] sm:$0xff]
        %v183 = vld [vmem:[%s1 + $0x48] sm:$0xff]
        %v184 = vld [vmem:[%s1 + $0x50] sm:$0xff]
        %v185 = vld [vmem:[%s1 + $0x58] sm:$0xff]
        %v186 = vld [vmem:[%s1 + $0x60] sm:$0xff]
        %v187 = vld [vmem:[%s1 + $0x68] sm:$0xff]
        %v188 = vld [vmem:[%s1 + $0x70] sm:$0xff]
        %v189 = vld [vmem:[%s1 + $0x78] sm:$0xff]
        %v190 = vld [vmem:[%s1 + $0x80] sm:$0xff]
        %v191 = vld [vmem:[%s1 + $0x88] sm:$0xff]
        %v192 = vld [vmem:[%s1 + $0x90] sm:$0xff]
        %v193 = vld [vmem:[%s1 + $0x98] sm:$0xff]
        %v194 = vld [vmem:[%s1 + $0xa0] sm:$0xff]
        %v195 = vld [vmem:[%s1 + $0xa8] sm:$0xff]
        %v196 = vld [vmem:[%s1 + $0xb0] sm:$0xff]
        %v197 = vld [vmem:[%s1 + $0xb8] sm:$0xff]
        %v198 = vld [vmem:[%s1 + $0xc0] sm:$0xff]
        %v199 = vld [vmem:[%s1 + $0xc8] sm:$0xff]
        %v200 = vld [vmem:[%s1 + $0xd0] sm:$0xff]
        %v201 = vld [vmem:[%s1 + $0xd8] sm:$0xff]
        %v202 = vld [vmem:[%s1 + $0xe0] sm:$0xff]
        %v203 = vld [vmem:[%s1 + $0xe8] sm:$0xff]
        %v204 = vld [vmem:[%s1 + $0xf0] sm:$0xff]
        %v205 = vld [vmem:[%s1 + $0xf8] sm:$0xff]
        %v206 = vld [vmem:[%s2] sm:$0x3]
        %v208 = vlaneseq
        %v209 = vshrl.u32 %v208, 7
        %v210 = vsub.s32 0, %v209
        %v211 = vrot.slane %v206, %v210
        %v212 = vlaneseq
        %v213 = vshrl.u32 %v212, 7
        %v214 = vsub.s32 1, %v213
        %v215 = vrot.slane %v206, %v214
        %vm218 = vcmask 261120
        %v220 = vsel %vm218, %v172, 0
        %v223 = vsel %vm218, %v173, 0
        %v226 = vsel %vm218, %v174, 0
        %v229 = vsel %vm218, %v175, 0
        %v232 = vsel %vm218, %v176, 0
        %v235 = vsel %vm218, %v177, 0
        %v238 = vsel %vm218, %v178, 0
        %v241 = vsel %vm218, %v179, 0
        %v244 = vsel %vm218, %v180, 0
        %v247 = vsel %vm218, %v181, 0
        %v250 = vsel %vm218, %v182, 0
        %v253 = vsel %vm218, %v183, 0
        %v256 = vsel %vm218, %v184, 0
        %v259 = vsel %vm218, %v185, 0
        %v262 = vsel %vm218, %v186, 0
        %v265 = vsel %vm218, %v187, 0
        %v268 = vsel %vm218, %v188, 0
        %v271 = vsel %vm218, %v189, 0
        %v274 = vsel %vm218, %v190, 0
        %v277 = vsel %vm218, %v191, 0
        %v280 = vsel %vm218, %v192, 0
        %v283 = vsel %vm218, %v193, 0
        %v286 = vsel %vm218, %v194, 0
        %v289 = vsel %vm218, %v195, 0
        %v292 = vsel %vm218, %v196, 0
        %v295 = vsel %vm218, %v197, 0
        %v298 = vsel %vm218, %v198, 0
        %v301 = vsel %vm218, %v199, 0
        %v304 = vsel %vm218, %v200, 0
        %v307 = vsel %vm218, %v201, 0
        %v310 = vsel %vm218, %v202, 0
        %v313 = vsel %vm218, %v203, 0
        %v316 = vsel %vm218, %v204, 0
        %v319 = vsel %vm218, %v205, 0
        %321 = vmatprep.subr.mxu0 0.0
        %322 = vmatpush1.xpose.msra.mxu0 %v226
        %323 = vmatprep.subr.mxu0 0.0
        %324 = vmatpush1.xpose.msra.mxu0 %v229
        %325 = vmatprep.subr.mxu0 0.0
        %326 = vmatpush1.xpose.msra.mxu0 %v232
        %327 = vmatprep.subr.mxu0 0.0
        %328 = vmatpush1.xpose.msra.mxu0 %v235
        %329 = vmatprep.subr.mxu0 0.0
        %330 = vmatpush1.xpose.msra.mxu0 %v238
        %331 = vmatprep.subr.mxu0 0.0
        %332 = vmatpush1.xpose.msra.mxu0 %v241
        %333 = vmatprep.subr.mxu0 0.0
        %334 = vmatpush1.xpose.msra.mxu0 %v244
        %335 = vmatprep.subr.mxu0 0.0
        %336 = vmatpush1.xpose.msra.mxu0 %v247
        %337 = vmatprep.subr.mxu0 0.0
        %338 = vmatpush1.xpose.msra.mxu0 %v250
        %339 = vmatprep.subr.mxu0 0.0
        %340 = vmatpush1.xpose.msra.mxu0 %v253
        %341 = vmatprep.subr.mxu0 0.0
        %342 = vmatpush1.xpose.msra.mxu0 %v256
        %343 = vmatprep.subr.mxu0 0.0
        %344 = vmatpush1.xpose.msra.mxu0 %v259
        %345 = vmatprep.subr.mxu0 0.0
        %346 = vmatpush1.xpose.msra.mxu0 %v262
        %347 = vmatprep.subr.mxu0 0.0
        %348 = vmatpush1.xpose.msra.mxu0 %v265
        %349 = vmatprep.subr.mxu0 0.0
        %350 = vmatpush1.xpose.msra.mxu0 %v268
        %351 = vmatprep.subr.mxu0 0.0
        %352 = vmatpush1.xpose.msra.mxu0 %v271
        %353 = vmatprep.subr.mxu0 0.0
        %354 = vmatpush1.xpose.msra.mxu0 %v274
        %355 = vmatprep.subr.mxu0 0.0
        %356 = vmatpush1.xpose.msra.mxu0 %v277
        %357 = vmatprep.subr.mxu0 0.0
        %358 = vmatpush1.xpose.msra.mxu0 %v280
        %359 = vmatprep.subr.mxu0 0.0
        %360 = vmatpush1.xpose.msra.mxu0 %v283
        %361 = vmatprep.subr.mxu0 0.0
        %362 = vmatpush1.xpose.msra.mxu0 %v286
        %363 = vmatprep.subr.mxu0 0.0
        %364 = vmatpush1.xpose.msra.mxu0 %v289
        %365 = vmatprep.subr.mxu0 0.0
        %366 = vmatpush1.xpose.msra.mxu0 %v292
        %367 = vmatprep.subr.mxu0 0.0
        %368 = vmatpush1.xpose.msra.mxu0 %v295
        %369 = vmatprep.subr.mxu0 0.0
        %370 = vmatpush1.xpose.msra.mxu0 %v298
        %371 = vmatprep.subr.mxu0 0.0
        %372 = vmatpush1.xpose.msra.mxu0 %v301
        %373 = vmatprep.subr.mxu0 0.0
        %374 = vmatpush1.xpose.msra.mxu0 %v304
        %375 = vmatprep.subr.mxu0 0.0
        %376 = vmatpush1.xpose.msra.mxu0 %v307
        %377 = vmatprep.subr.mxu0 0.0
        %378 = vmatpush1.xpose.msra.mxu0 %v310
        %379 = vmatprep.subr.mxu0 0.0
        %380 = vmatpush1.xpose.msra.mxu0 %v313
        %381 = vmatprep.subr.mxu0 0.0
        %382 = vmatpush1.xpose.msra.mxu0 %v316
        %383 = vmatprep.subr.mxu0 0.0
        %384 = vmatpush1.xpose.msra.mxu0 %v319
        %385 = vmatprep.mubr.f32.mxu0 0.0
        %386 = vmatmul.mubr.f32.gmra.mrb[0].mxu0 %v220
        %v387 = vpop.f32.mrb[0].mxu0
        %v388 = vadd.f32 %v211, %v387
        %v389 = vpop.f32.mrb[0].mxu0
        %v390 = vadd.f32 %v215, %v389
        %391 = vmatprep.mubr.f32.mxu0 0.0
        %392 = vmatmul.mubr.f32.gmra.mrb[0].mxu0 %v223
        %v393 = vpop.f32.mrb[0].mxu0
        %v394 = vadd.f32 %v211, %v393
        %v395 = vpop.f32.mrb[0].mxu0
        %v396 = vadd.f32 %v215, %v395
        %397 = vdwg.mxu0
        %v398 = vmax.f32 %v388, 0.0
        %v399 = vmax.f32 %v390, 0.0
        %v400 = vmax.f32 %v394, 0.0
        %v401 = vmax.f32 %v396, 0.0
        %402 = vst [vmem:[%s164] sm:$0xff] %v398
        %403 = vst [vmem:[%s164 + $0x8] sm:$0xff] %v399
        %404 = vst [vmem:[%s164 + $0x10] sm:$0xff] %v400
        %405 = vst [vmem:[%s164 + $0x18] sm:$0xff] %v401
        %s406 = sand.u32 %s93, 1
        %s407 = scalar_lea.sflag [#allocation3], %s406
        %s408 = sand.u32 %s93, 1
        %s409 = smul.addr %s408, 32
        %s410 = scalar_lea.vmem [#allocation2], %s409
        // Predicated region
        $region33: #{relu_layer_forward.1} parent=31 // pred_check
          %p411 = pneg %p103
        $region34: #{relu_layer_forward.1} parent=31 // pred_check_branch
          %413 = sbr.rel (%p411) target = $region36
        $region35: #{relu_layer_forward.1} parent=31 // pred_region
          %s414 = smul.u32 2, %s17
          %s416 = ssub.s32 512, 512
          %417 = vsyncadd %s407, %s416
          %s418 = smul.addr %s414, 2
          %s419 = smul.addr %s418, 128
          %s420 = scalar_lea.hbm %s3, %s419
          %s421 = sshll.u32 %s410, 4
          %s422 = int_to_ptr.vmem [resolvable:$true] %s421
          %427 = dma.vmem_to_hbm [thread:$0]  %s422, 512, %s420, %s407, 256, 256, 16
        $region36: #{relu_layer_forward.1} parent=31 // pred_fallthru
          _
      $region32: #{relu_layer_forward.1} parent=5 // pred_fallthru
        _
      %p428 = scmp.le.s32.totalorder 2, %s12
      // Predicated region
      $region37: #{relu_layer_forward.1} parent=5 // pred_check
        %p429 = pneg %p428
      $region38: #{relu_layer_forward.1} parent=5 // pred_check_branch
        %431 = sbr.rel (%p429) target = $region40
      $region39: #{relu_layer_forward.1} parent=5 // pred_region
        %s432 = ssub.s32 %s12, 2
        // Predicated region
        $region41: #{relu_layer_forward.1} parent=39 // pred_check
          %p433 = pneg %p109
        $region42: #{relu_layer_forward.1} parent=39 // pred_check_branch
          %435 = sbr.rel (%p433) target = $region44
        $region43: #{relu_layer_forward.1} parent=39 // pred_region
          %s436 = sand.u32 %s94, 1
          %s437 = scalar_lea.sflag [#allocation3], %s436
          %s438 = sand.u32 %s94, 1
          %s439 = smul.addr %s438, 32
          %s440 = scalar_lea.vmem [#allocation2], %s439
          %441 = dma.done %s437, 512
        $region44: #{relu_layer_forward.1} parent=39 // pred_fallthru
          _
      $region40: #{relu_layer_forward.1} parent=5 // pred_fallthru
        _
    $region6: #{relu_layer_forward.1} parent=1 // loop_footer
      %s16 = sadd.s32 1, %s12
    $region7: #{relu_layer_forward.1} parent=1 // loop_footer_branch
      %11 = sbr.rel target = $region3
    $region8: #{relu_layer_forward.1} parent=1 // loop_exit
      _
    %442 = vsyncpa [#allocation3], 1
    %s443 = scalar_lea.sflag [#allocation3], 1
    %444 = vsyncpa %s443, 1

</llo_original>
